<compile_context>
chip_gen: v7x
topology: tpu7x:2x2x1
jax: 0.10.0
libtpu: 0.0.40
codegen_flags: <defaults>
</compile_context>

<pallas_src>
import functools

import jax
import jax.numpy as jnp
from jax.experimental import pallas as pl
from jax.experimental.pallas import tpu as pltpu


def _slayer_exp_kernel(xa_ref, nd_ref, wt_ref, out_ref, acc_ref):
    """One (batch b, N-tile j, P-tile k) grid step.

    xa_ref  : (1, TP, K_pad)  augmented points [x^2, x, 1] (zero-padded rows/cols)
    nd_ref  : (1, 1, TP)      not-dummy mask for this point tile
    wt_ref  : (K_pad, TN)     negated distance weights (VMEM-resident across k)
    out_ref : (1, 1, TN)      output tile (resident across k)
    acc_ref : (1, TN)         f32 accumulator scratch
    """
    k = pl.program_id(2)

    @pl.when(k == 0)
    def _init():
        acc_ref[...] = jnp.zeros_like(acc_ref)

    # -dist on the MXU: (TP, K_pad) @ (K_pad, TN) -> (TP, TN); negation was
    # folded into the weight matrix in the wrapper.
    neg_dist = jnp.dot(
        xa_ref[0], wt_ref[...],
        preferred_element_type=jnp.float32,
        precision=jax.lax.Precision.HIGHEST)
    vals = jnp.exp(neg_dist)                                   # EUP

    # Mask + sum over points fused into a (1, TP) @ (TP, TN) MXU matmul.
    acc_ref[...] += jnp.dot(
        nd_ref[0], vals,
        preferred_element_type=jnp.float32,
        precision=jax.lax.Precision.HIGHEST)

    @pl.when(k == pl.num_programs(2) - 1)
    def _finalize():
        out_ref[0] = acc_ref[...]


def _round_up(x, m):
    return ((x + m - 1) // m) * m


@functools.partial(jax.jit, static_argnames=("tn", "tp_max"))
def slayer_exponential(batch, not_dummy, centers, sharpness, *, tn=128,
                       tp_max=512):
    """SLayerExponential forward.

    batch (B,P,D) f32, not_dummy (B,P) f32, centers/sharpness (N,D) f32
    -> (B,N) f32 (squeezed, mirroring the PyTorch module).
    """
    B, P, D = batch.shape
    N = centers.shape[0]

    K = 2 * D + 1
    K_pad = _round_up(K, 8)
    N_pad = _round_up(N, tn)

    # Point tile: single step for small P, else tp_max-wide tiles (multiple of
    # 128 so the (1, 1, TP) mask block stays lane-aligned).
    if P <= tp_max:
        tp = _round_up(max(P, 1), 8)
        P_pad = tp
    else:
        tp = tp_max
        P_pad = _round_up(P, tp)

    x = batch.astype(jnp.float32)
    c = centers.astype(jnp.float32)
    s2 = sharpness.astype(jnp.float32) ** 2

    # dist[p,n] = sum_d s2*(c-x)^2 = [x^2, x, 1] . [s2, -2*s2*c, sum_d s2*c^2].
    # Hoisted out of the kernel; negated once so the kernel does exp(matmul)
    # with no extra VPU pass. Padded N columns get all-zero weights (the extra
    # outputs are sliced off below); padded K columns are zero on both sides.
    w = jnp.concatenate(
        [s2, -2.0 * s2 * c, jnp.sum(s2 * c * c, axis=1, keepdims=True)],
        axis=1)                                                  # (N, K)
    w_t = (-jnp.pad(w, ((0, N_pad - N), (0, K_pad - K)))).T      # (K_pad, N_pad)

    x_aug = jnp.concatenate(
        [x * x, x, jnp.ones((B, P, 1), jnp.float32)], axis=-1)   # (B, P, K)
    x_aug = jnp.pad(x_aug, ((0, 0), (0, P_pad - P), (0, K_pad - K)))
    nd = jnp.pad(not_dummy.astype(jnp.float32),
                 ((0, 0), (0, P_pad - P))).reshape(B, 1, P_pad)

    grid = (B, N_pad // tn, P_pad // tp)

    out = pl.pallas_call(
        _slayer_exp_kernel,
        out_shape=jax.ShapeDtypeStruct((B, 1, N_pad), jnp.float32),
        grid_spec=pltpu.PrefetchScalarGridSpec(
            num_scalar_prefetch=0,
            grid=grid,
            in_specs=[
                pl.BlockSpec((1, tp, K_pad), lambda b, j, k: (b, k, 0)),
                pl.BlockSpec((1, 1, tp), lambda b, j, k: (b, 0, k)),
                pl.BlockSpec((K_pad, tn), lambda b, j, k: (0, j)),
            ],
            out_specs=pl.BlockSpec((1, 1, tn), lambda b, j, k: (b, 0, j)),
            scratch_shapes=[pltpu.VMEM((1, tn), jnp.float32)],
        ),
        compiler_params=pltpu.CompilerParams(
            dimension_semantics=("parallel", "parallel", "arbitrary"),
            vmem_limit_bytes=32 * 1024 * 1024,
        ),
    )(x_aug, nd, w_t)

    # Drop N padding, mirror PyTorch's trailing .squeeze().
    return jnp.squeeze(out[:, 0, :N])


def prepare_batch(list_of_point_sets, point_dim):
    """JAX port of torchph prepare_batch (host-side glue, not the hot path)."""
    batch_size = len(list_of_point_sets)
    max_points = max(int(x.shape[0]) for x in list_of_point_sets)
    max_points = max(max_points, 1)
    batch = jnp.zeros((batch_size, max_points, point_dim), jnp.float32)
    not_dummy = jnp.zeros((batch_size, max_points), jnp.float32)
    for i, pts in enumerate(list_of_point_sets):
        n = int(pts.shape[0])
        if n > 0:
            batch = batch.at[i, :n, :].set(pts.astype(jnp.float32))
            not_dummy = not_dummy.at[i, :n].set(1.0)
    return batch, not_dummy, max_points, batch_size


def reference(batch, not_dummy, centers, sharpness):
    """Pure-JAX reference matching the PyTorch forward exactly."""
    s2 = sharpness ** 2
    diff = centers[None, :, None, :] - batch[:, None, :, :]      # (B, N, P, D)
    dist = jnp.sum(diff * diff * s2[None, :, None, :], axis=-1)  # (B, N, P)
    vals = jnp.exp(-dist) * not_dummy[:, None, :]
    return jnp.squeeze(jnp.sum(vals, axis=-1))                   # (B, N)


if __name__ == "__main__":
    key = jax.random.PRNGKey(0)
    k_c, k_p1, k_p2 = jax.random.split(key, 3)

    n_elements = 32        # N
    point_dimension = 2    # D

    # Parameter init matching the module defaults: centers ~ U[0,1),
    # sharpness = 3 * ones.
    centers = jax.random.uniform(k_c, (n_elements, point_dimension),
                                 dtype=jnp.float32)
    sharpness = jnp.ones((n_elements, point_dimension), jnp.float32) * 3.0

    # Input: a "list of multisets" with different cardinalities (5 and 8 pts).
    pts_a = jax.random.uniform(k_p1, (5, point_dimension), dtype=jnp.float32)
    pts_b = jax.random.uniform(k_p2, (8, point_dimension), dtype=jnp.float32)
    batch, not_dummy, max_points, batch_size = prepare_batch(
        [pts_a, pts_b], point_dimension)

    out = slayer_exponential(batch, not_dummy, centers, sharpness)
    out = jax.block_until_ready(out)

    ref = reference(batch, not_dummy, centers, sharpness)
    assert out.shape == (batch_size, n_elements), out.shape
    assert jnp.allclose(out, ref, atol=1e-4, rtol=1e-4), (
        "mismatch vs reference, max abs err = "
        + str(float(jnp.max(jnp.abs(out - ref)))))

    print("KERNEL_OK")
</pallas_src>

<mosaic_0001>
module attributes {stable_mosaic.version = 11 : i64} {
  func.func @_slayer_exp_kernel(%arg0: i32, %arg1: i32, %arg2: i32, %arg3: memref<1x8x8xf32, #tpu.memory_space<vmem>>, %arg4: memref<1x1x8xf32, #tpu.memory_space<vmem>>, %arg5: memref<8x128xf32, #tpu.memory_space<vmem>>, %arg6: memref<1x1x128xf32, #tpu.memory_space<vmem>>, %arg7: memref<1x128xf32, #tpu.memory_space<vmem>>) attributes {dimension_semantics = [#tpu.dimension_semantics<parallel>, #tpu.dimension_semantics<parallel>, #tpu.dimension_semantics<arbitrary>], iteration_bounds = array<i64: 2, 1, 1>, scalar_prefetch = 0 : i64, scratch_operands = 1 : i64, tpu.core_type = #tpu.core_type<tc>, window_params = [{transform_indices = @transform_0, window_bounds = array<i64: 1, 8, 8>}, {transform_indices = @transform_1, window_bounds = array<i64: 1, 1, 8>}, {transform_indices = @transform_2, window_bounds = array<i64: 8, 128>}, {transform_indices = @transform_3, window_bounds = array<i64: 1, 1, 128>}]} {
    %c0_i32 = arith.constant 0 : i32
    %0 = arith.cmpi eq, %arg2, %c0_i32 : i32
    %1 = arith.extui %0 : i1 to i32
    %c0_i32_0 = arith.constant 0 : i32
    %2 = arith.cmpi ne, %1, %c0_i32_0 : i32
    scf.if %2 {
      %cst_15 = arith.constant 0.000000e+00 : f32
      %17 = vector.broadcast %cst_15 : f32 to vector<1x128xf32>
      %c0_16 = arith.constant 0 : index
      %c0_17 = arith.constant 0 : index
      %18 = vector.load %arg7[%c0_16, %c0_17] : memref<1x128xf32, #tpu.memory_space<vmem>>, vector<1x128xf32>
      tpu.vector_store %arg7[%c0_16, %c0_17], %17 {strides = array<i32>} : memref<1x128xf32, #tpu.memory_space<vmem>>, vector<1x128xf32>,
    } else {
    }
    %c0 = arith.constant 0 : index
    %c0_1 = arith.constant 0 : index
    %c0_2 = arith.constant 0 : index
    %3 = vector.load %arg3[%c0, %c0_1, %c0_2] : memref<1x8x8xf32, #tpu.memory_space<vmem>>, vector<1x8x8xf32>
    %4 = vector.shape_cast %3 : vector<1x8x8xf32> to vector<8x8xf32>
    %c0_3 = arith.constant 0 : index
    %c0_4 = arith.constant 0 : index
    %5 = vector.load %arg5[%c0_3, %c0_4] : memref<8x128xf32, #tpu.memory_space<vmem>>, vector<8x128xf32>
    %cst = arith.constant dense<0.000000e+00> : vector<8x128xf32>
    %6 = tpu.matmul %4, %5, %cst {dimension_numbers = #tpu.dot_dimension_numbers<[1], [0], [0], [1], [0, 0, 1, 1], [], []>, precision = #tpu.contract_precision<fp32>} : vector<8x8xf32>, vector<8x128xf32>, vector<8x128xf32> -> vector<8x128xf32>
    %7 = math.exp %6 : vector<8x128xf32>
    %c0_5 = arith.constant 0 : index
    %c0_6 = arith.constant 0 : index
    %8 = vector.load %arg7[%c0_5, %c0_6] : memref<1x128xf32, #tpu.memory_space<vmem>>, vector<1x128xf32>
    %c0_7 = arith.constant 0 : index
    %c0_8 = arith.constant 0 : index
    %c0_9 = arith.constant 0 : index
    %9 = vector.load %arg4[%c0_7, %c0_8, %c0_9] : memref<1x1x8xf32, #tpu.memory_space<vmem>>, vector<1x1x8xf32>
    %10 = vector.shape_cast %9 : vector<1x1x8xf32> to vector<1x8xf32>
    %cst_10 = arith.constant dense<0.000000e+00> : vector<1x128xf32>
    %11 = tpu.matmul %10, %7, %cst_10 {dimension_numbers = #tpu.dot_dimension_numbers<[1], [0], [0], [1], [0, 0, 1, 1], [], []>, precision = #tpu.contract_precision<fp32>} : vector<1x8xf32>, vector<8x128xf32>, vector<1x128xf32> -> vector<1x128xf32>
    %12 = arith.addf %8, %11 : vector<1x128xf32>
    %c0_11 = arith.constant 0 : index
    %c0_12 = arith.constant 0 : index
    %13 = vector.load %arg7[%c0_11, %c0_12] : memref<1x128xf32, #tpu.memory_space<vmem>>, vector<1x128xf32>
    tpu.vector_store %arg7[%c0_11, %c0_12], %12 {strides = array<i32>} : memref<1x128xf32, #tpu.memory_space<vmem>>, vector<1x128xf32>,
    %c0_i32_13 = arith.constant 0 : i32
    %14 = arith.cmpi eq, %arg2, %c0_i32_13 : i32
    %15 = arith.extui %14 : i1 to i32
    %c0_i32_14 = arith.constant 0 : i32
    %16 = arith.cmpi ne, %15, %c0_i32_14 : i32
    scf.if %16 {
      %c0_15 = arith.constant 0 : index
      %c0_16 = arith.constant 0 : index
      %17 = vector.load %arg7[%c0_15, %c0_16] : memref<1x128xf32, #tpu.memory_space<vmem>>, vector<1x128xf32>
      %c0_17 = arith.constant 0 : index
      %c0_18 = arith.constant 0 : index
      %c0_19 = arith.constant 0 : index
      %18 = vector.load %arg6[%c0_17, %c0_18, %c0_19] : memref<1x1x128xf32, #tpu.memory_space<vmem>>, vector<1x1x128xf32>
      %19 = vector.shape_cast %18 : vector<1x1x128xf32> to vector<1x128xf32>
      %20 = vector.shape_cast %17 : vector<1x128xf32> to vector<1x1x128xf32>
      tpu.vector_store %arg6[%c0_17, %c0_18, %c0_19], %20 {strides = array<i32>} : memref<1x1x128xf32, #tpu.memory_space<vmem>>, vector<1x1x128xf32>,
    } else {
    }
    return
  }
  func.func @transform_0(%arg0: i32, %arg1: i32, %arg2: i32) -> (i32, i32, i32) {
    %c0_i32 = arith.constant 0 : i32
    %c0_i32_0 = arith.constant 0 : i32
    return %arg0, %arg2, %c0_i32 : i32, i32, i32
  }
  func.func @transform_1(%arg0: i32, %arg1: i32, %arg2: i32) -> (i32, i32, i32) {
    %c0_i32 = arith.constant 0 : i32
    %c0_i32_0 = arith.constant 0 : i32
    return %arg0, %c0_i32, %arg2 : i32, i32, i32
  }
  func.func @transform_2(%arg0: i32, %arg1: i32, %arg2: i32) -> (i32, i32) {
    %c0_i32 = arith.constant 0 : i32
    %c0_i32_0 = arith.constant 0 : i32
    return %c0_i32, %arg1 : i32, i32
  }
  func.func @transform_3(%arg0: i32, %arg1: i32, %arg2: i32) -> (i32, i32, i32) {
    %c0_i32 = arith.constant 0 : i32
    %c0_i32_0 = arith.constant 0 : i32
    return %arg0, %c0_i32, %arg1 : i32, i32, i32
  }
}

</mosaic_0001>

<llo_original>
// kernel: mul.11
$region0: #{mul.11}
  #allocation0 [shape = 's32[1]{0}', space=sflag, size = 0x4, scoped, tag = 'scoped memory for mul.11']
  %s0 = inlined_call_operand.vmem [shape: f32[2,8,2], index: 0, kind: input, shape index: {}, may-alias: {0,1}]
  %s1 = inlined_call_operand.vmem [shape: f32[2,8,2], index: 1, kind: input, shape index: {}, may-alias: {0,1}]
  %s2 = inlined_call_operand.vmem [shape: f32[2,8,2], index: 2, kind: output, shape index: {}]
  %v3 = vld [vmem:[%s0] sm:$0xff]
  %v4 = vld [vmem:[%s1] sm:$0xff]
  %5 = xla_tuple %v3, %v4
  %6 = xla_tuple %5
  %v7 = vmul.f32 %v3, %v4
  %8 = xla_tuple %v7
  %9 = vst [vmem:[%s2] sm:$0xff] %v7
  %s10 = scalar_lea.vmem %s0, 8
  %v11 = vld [vmem:[%s10] sm:$0xff]
  %s12 = scalar_lea.vmem %s1, 8
  %v13 = vld [vmem:[%s12] sm:$0xff]
  %14 = xla_tuple %v11, %v13
  %15 = xla_tuple %14
  %v16 = vmul.f32 %v11, %v13
  %17 = xla_tuple %v16
  %s18 = scalar_lea.vmem %s2, 8
  %19 = vst [vmem:[%s18] sm:$0xff] %v16

// kernel: slayer_exponential.1
$region0: #{slayer_exponential.1}
  #allocation0 [shape = 'u32[]', space=smem, size = 0x4, offset = 0x4, fixed_abs, tag = 'smem constant byte address 0x4 - core index']
  #allocation1 [shape = 'u32[144,128]{1,0:T(1,128)}', space=vmem, size = 0x12000, scoped, tag = 'internal scratch']
  #allocation2 [shape = 'f32[1,128]{1,0:T(1,128)}', space=vmem, size = 0x200, scoped, tag = 'scratch operand']
  %s0 = inlined_call_operand.vmem [shape: f32[2,8,8], index: 0, kind: input, shape index: {}]
  %s1 = inlined_call_operand.vmem [shape: f32[2,1,8], index: 1, kind: input, shape index: {}]
  %s2 = inlined_call_operand.vmem [shape: f32[8,128], index: 2, kind: input, shape index: {}]
  %s3 = inlined_call_operand.hbm [shape: f32[2,1,128], index: 3, kind: output, shape index: {}]
  %s4 = sld [smem:[#allocation0]]
  $region53: #{slayer_exponential.1} parent=0
    _
  %s6 = ssub.s32 1, %s4
  %s7 = scalar_select 0, %s6, %s4
  $region1: #{slayer_exponential.1} parent=0
    #allocation3 [shape = 'u8[1024]{0}', space=vmem, size = 0x400, scoped, tag = 'output window, operand 0']
    #allocation4 [shape = 's32[2]{0}', space=sflag, size = 0x8, scoped, tag = 'scoped memory for slayer_exponential.1']
    %8 = vsyncpa [#allocation4], 0
    %s9 = scalar_lea.sflag [#allocation4], 1
    %10 = vsyncpa %s9, 0
    loop: start=0, step=1, limit=4
    $region2: #{slayer_exponential.1} parent=1 // loop_pre_header
      _
    $region3: #{slayer_exponential.1} parent=1 // loop_header
      %s12 = sphi 0, %s16
      %p13 = scmp.ge.s32.totalorder %s12, 4
      %s19 = sphi 0, %s38
      %s20 = sphi 0, %s34
      %s21 = sphi 0, %s30
      %s22 = sphi 0, %s19
      %s23 = sphi 0, %s20
      %s24 = sphi 0, %s21
      %s25 = sphi 0, %s22
      %s26 = sphi 0, %s23
      %s27 = sphi 0, %s24
      %s43 = sphi 0, %s45
      %s46 = sphi 0, %s43
      %s47 = sphi 0, %s46
      %s63 = sphi 0, %s47
      %s71 = sphi 0, %s73
      %s74 = sphi 0, %s71
      %s75 = sphi 0, %s74
      %s91 = sphi 0, %s75
      %s97 = sphi 0, %s99
      %s100 = sphi 0, %s97
      %s101 = sphi 0, %s100
      %s117 = sphi 0, %s101
      %s125 = sphi 0, %s127
      %s128 = sphi 0, %s125
      %s129 = sphi 0, %s128
      %s145 = sphi 0, %s129
    $region4: #{slayer_exponential.1} parent=1 // loop_header_branch
      %15 = sbr.rel (%p13) target = $region8
    $region5: #{slayer_exponential.1} parent=1 // loop_body
      %s17 = ssub.s32 %s12, 1
      %s18 = ssub.s32 %s12, 2
      %s28 = sadd.s32 1, %s21
      %p29 = scmp.ge.s32.totalorder %s28, 1
      %s30 = scalar_select %p29, 0, %s28
      %s31 = sadd.s32 1, %s20
      %s32 = scalar_select %p29, %s31, %s20
      %p33 = scmp.ge.s32.totalorder %s32, 1
      %s34 = scalar_select %p33, 0, %s32
      %s35 = sadd.s32 1, %s19
      %s36 = scalar_select %p33, %s35, %s19
      %p37 = scmp.ge.s32.totalorder %s36, 2
      %s38 = scalar_select %p37, 0, %s36
      %s39 = ssub.s32 %s19, %s38
      %s40 = ssub.s32 %s21, %s30
      %s41 = sor.u32 %s39, %s40
      %p42 = scmp.eq.s32.totalorder %s41, 0
      %s44 = sadd.s32 %s43, 1
      %s45 = scalar_select %p42, %s43, %s44
      %p48 = pneg %p42
      %p49 = scmp.eq.s32.totalorder %s12, 1
      %p50 = por %p48, %p49
      %p51 = scmp.ne.s32.totalorder %s43, %s46
      %p52 = scmp.eq.s32.totalorder %s12, 0
      %p53 = por %p51, %p52
      %p54 = scmp.ne.s32.totalorder %s43, %s46
      %p55 = scmp.eq.s32.totalorder %s17, 1
      %p56 = por %p54, %p55
      %p57 = scmp.ne.s32.totalorder %s46, %s47
      %p58 = scmp.eq.s32.totalorder %s17, 0
      %p59 = por %p57, %p58
      %p60 = scmp.ne.s32.totalorder %s46, %s47
      %p61 = scmp.eq.s32.totalorder %s18, 1
      %p62 = por %p60, %p61
      %p64 = scmp.ne.s32.totalorder %s47, %s63
      %p65 = scmp.eq.s32.totalorder %s18, 0
      %p66 = por %p64, %p65
      %s67 = ssub.s32 %s19, %s38
      %s68 = ssub.s32 %s21, %s30
      %s69 = sor.u32 %s67, %s68
      %p70 = scmp.eq.s32.totalorder %s69, 0
      %s72 = sadd.s32 %s71, 1
      %s73 = scalar_select %p70, %s71, %s72
      %p76 = pneg %p70
      %p77 = scmp.eq.s32.totalorder %s12, 1
      %p78 = por %p76, %p77
      %p79 = scmp.ne.s32.totalorder %s71, %s74
      %p80 = scmp.eq.s32.totalorder %s12, 0
      %p81 = por %p79, %p80
      %p82 = scmp.ne.s32.totalorder %s71, %s74
      %p83 = scmp.eq.s32.totalorder %s17, 1
      %p84 = por %p82, %p83
      %p85 = scmp.ne.s32.totalorder %s74, %s75
      %p86 = scmp.eq.s32.totalorder %s17, 0
      %p87 = por %p85, %p86
      %p88 = scmp.ne.s32.totalorder %s74, %s75
      %p89 = scmp.eq.s32.totalorder %s18, 1
      %p90 = por %p88, %p89
      %p92 = scmp.ne.s32.totalorder %s75, %s91
      %p93 = scmp.eq.s32.totalorder %s18, 0
      %p94 = por %p92, %p93
      %s95 = ssub.s32 %s20, %s34
      %p96 = scmp.eq.s32.totalorder %s95, 0
      %s98 = sadd.s32 %s97, 1
      %s99 = scalar_select %p96, %s97, %s98
      %p102 = pneg %p96
      %p103 = scmp.eq.s32.totalorder %s12, 1
      %p104 = por %p102, %p103
      %p105 = scmp.ne.s32.totalorder %s97, %s100
      %p106 = scmp.eq.s32.totalorder %s12, 0
      %p107 = por %p105, %p106
      %p108 = scmp.ne.s32.totalorder %s97, %s100
      %p109 = scmp.eq.s32.totalorder %s17, 1
      %p110 = por %p108, %p109
      %p111 = scmp.ne.s32.totalorder %s100, %s101
      %p112 = scmp.eq.s32.totalorder %s17, 0
      %p113 = por %p111, %p112
      %p114 = scmp.ne.s32.totalorder %s100, %s101
      %p115 = scmp.eq.s32.totalorder %s18, 1
      %p116 = por %p114, %p115
      %p118 = scmp.ne.s32.totalorder %s101, %s117
      %p119 = scmp.eq.s32.totalorder %s18, 0
      %p120 = por %p118, %p119
      %s121 = ssub.s32 %s19, %s38
      %s122 = ssub.s32 %s20, %s34
      %s123 = sor.u32 %s121, %s122
      %p124 = scmp.eq.s32.totalorder %s123, 0
      %s126 = sadd.s32 %s125, 1
      %s127 = scalar_select %p124, %s125, %s126
      %p130 = pneg %p124
      %p131 = scmp.eq.s32.totalorder %s12, 1
      %p132 = por %p130, %p131
      %p133 = scmp.ne.s32.totalorder %s125, %s128
      %p134 = scmp.eq.s32.totalorder %s12, 0
      %p135 = por %p133, %p134
      %p136 = scmp.ne.s32.totalorder %s125, %s128
      %p137 = scmp.eq.s32.totalorder %s17, 1
      %p138 = por %p136, %p137
      %p139 = scmp.ne.s32.totalorder %s128, %s129
      %p140 = scmp.eq.s32.totalorder %s17, 0
      %p141 = por %p139, %p140
      %p142 = scmp.ne.s32.totalorder %s128, %s129
      %p143 = scmp.eq.s32.totalorder %s18, 1
      %p144 = por %p142, %p143
      %p146 = scmp.ne.s32.totalorder %s129, %s145
      %p147 = scmp.eq.s32.totalorder %s18, 0
      %p148 = por %p146, %p147
      %p149 = scmp.le.s32.totalorder 1, %s12
      %p150 = scmp.lt.s32.totalorder %s12, 3
      %p151 = pnand %p149, %p150
      %p152 = pneg %p151
      // Predicated region
      $region9: #{slayer_exponential.1} parent=5 // pred_check
        _
      $region10: #{slayer_exponential.1} parent=5 // pred_check_branch
        %154 = sbr.rel (%p151) target = $region12
      $region11: #{slayer_exponential.1} parent=5 // pred_region
        %s155 = ssub.s32 %s12, 1
        // Predicated region
        $region13: #{slayer_exponential.1} parent=11 // pred_check
          %p156 = pneg %p113
        $region14: #{slayer_exponential.1} parent=11 // pred_check_branch
          %158 = sbr.rel (%p156) target = $region16
        $region15: #{slayer_exponential.1} parent=11 // pred_region
          %p159 = scmp.lt.s32.totalorder %s23, 0
          %s160 = scalar_select %p159, %s23, 0
          %s161 = smul.addr %s160, 8
          %s162 = scalar_lea.vmem %s2, %s161
        $region16: #{slayer_exponential.1} parent=11 // pred_fallthru
          _
      $region12: #{slayer_exponential.1} parent=5 // pred_fallthru
        _
      %p163 = scmp.lt.s32.totalorder %s12, 2
      // Predicated region
      $region17: #{slayer_exponential.1} parent=5 // pred_check
        %p164 = pneg %p163
      $region18: #{slayer_exponential.1} parent=5 // pred_check_branch
        %166 = sbr.rel (%p164) target = $region20
      $region19: #{slayer_exponential.1} parent=5 // pred_region
        // Predicated region
        $region21: #{slayer_exponential.1} parent=19 // pred_check
          %p167 = pneg %p53
        $region22: #{slayer_exponential.1} parent=19 // pred_check_branch
          %169 = sbr.rel (%p167) target = $region24
        $region23: #{slayer_exponential.1} parent=19 // pred_region
          %p170 = scmp.lt.s32.totalorder %s19, 1
          %s171 = scalar_select %p170, %s19, 1
          %p172 = scmp.lt.s32.totalorder %s21, 0
          %s173 = scalar_select %p172, %s21, 0
          %s174 = sadd.s32 %s173, %s171
          %s175 = smul.addr %s174, 8
          %s176 = scalar_lea.vmem %s0, %s175
        $region24: #{slayer_exponential.1} parent=19 // pred_fallthru
          _
        // Predicated region
        $region25: #{slayer_exponential.1} parent=19 // pred_check
          %p177 = pneg %p81
        $region26: #{slayer_exponential.1} parent=19 // pred_check_branch
          %179 = sbr.rel (%p177) target = $region28
        $region27: #{slayer_exponential.1} parent=19 // pred_region
          %p180 = scmp.lt.s32.totalorder %s19, 1
          %s181 = scalar_select %p180, %s19, 1
          %p182 = scmp.lt.s32.totalorder %s21, 0
          %s183 = scalar_select %p182, %s21, 0
          %s184 = sadd.s32 %s183, %s181
          %s185 = scalar_lea.vmem %s1, %s184
        $region28: #{slayer_exponential.1} parent=19 // pred_fallthru
          _
      $region20: #{slayer_exponential.1} parent=5 // pred_fallthru
        _
      %p186 = scmp.le.s32.totalorder 1, %s12
      %p187 = scmp.lt.s32.totalorder %s12, 3
      %p188 = pnand %p186, %p187
      %p189 = pneg %p188
      // Predicated region
      $region29: #{slayer_exponential.1} parent=5 // pred_check
        _
      $region30: #{slayer_exponential.1} parent=5 // pred_check_branch
        %191 = sbr.rel (%p188) target = $region32
      $region31: #{slayer_exponential.1} parent=5 // pred_region
        %s192 = ssub.s32 %s12, 1
        %p193 = scmp.lt.s32.totalorder %s22, 1
        %s194 = scalar_select %p193, %s22, 1
        %p195 = scmp.lt.s32.totalorder %s24, 0
        %s196 = scalar_select %p195, %s24, 0
        %s197 = sadd.s32 %s196, %s194
        %s198 = smul.addr %s197, 8
        %s199 = scalar_lea.vmem %s0, %s198
        %p200 = pneg %p59
        %p201 = pneg %p56
        %p202 = scmp.lt.s32.totalorder %s22, 1
        %s203 = scalar_select %p202, %s22, 1
        %p204 = scmp.lt.s32.totalorder %s24, 0
        %s205 = scalar_select %p204, %s24, 0
        %s206 = sadd.s32 %s205, %s203
        %s207 = scalar_lea.vmem %s1, %s206
        %p208 = pneg %p87
        %p209 = pneg %p84
        %p210 = scmp.lt.s32.totalorder %s23, 0
        %s211 = scalar_select %p210, %s23, 0
        %s212 = smul.addr %s211, 8
        %s213 = scalar_lea.vmem %s2, %s212
        %p214 = pneg %p113
        %p215 = pneg %p110
        %p216 = pneg %p141
        %p217 = pneg %p138
        %s218 = sand.u32 %s128, 1
        %s219 = scalar_lea.sflag [#allocation4], %s218
        %s220 = sand.u32 %s128, 1
        %s221 = scalar_lea.vmem [#allocation3], %s220
        %p222 = scmp.lt.s32.totalorder %s22, 1
        %s223 = scalar_select %p222, %s22, 1
        %p224 = scmp.lt.s32.totalorder %s24, 0
        %s225 = scalar_select %p224, %s24, 0
        %s226 = sadd.s32 %s225, %s223
        %s227 = smul.addr %s226, 8
        %s228 = scalar_lea.vmem %s0, %s227
        %p229 = scmp.lt.s32.totalorder %s22, 1
        %s230 = scalar_select %p229, %s22, 1
        %p231 = scmp.lt.s32.totalorder %s24, 0
        %s232 = scalar_select %p231, %s24, 0
        %s233 = sadd.s32 %s232, %s230
        %s234 = scalar_lea.vmem %s1, %s233
        %p235 = scmp.lt.s32.totalorder %s23, 0
        %s236 = scalar_select %p235, %s23, 0
        %s237 = smul.addr %s236, 8
        %s238 = scalar_lea.vmem %s2, %s237
        %p239 = scmp.eq.s32.totalorder %s24, 0
        // Predicated region
        $region33: #{slayer_exponential.1} parent=31 // pred_check
          %p240 = pneg %p239
        $region34: #{slayer_exponential.1} parent=31 // pred_check_branch
          %242 = sbr.rel (%p240) target = $region36
        $region35: #{slayer_exponential.1} parent=31 // pred_region
          %243 = vst [vmem:[#allocation2] sm:$0x1] 0.0
        $region36: #{slayer_exponential.1} parent=31 // pred_fallthru
          _
        %v244 = vld [vmem:[%s228] sm:$0xff]
        %v245 = vld [vmem:[%s238] sm:$0xff]
        %vm246 = vcmask 64512
        %v248 = vsel %vm246, %v244, 0
        %250 = vmatprep.subr.mxu0 0.0
        %v251 = vand.u32 %v245, 4294901760
        %252 = vmatpush1.msra.mxu0 %v251
        %253 = vmatprep.subr.mxu0 0.0
        %254 = vmatpush1.msra.mxu0 0.0
        %255 = vmatprep.subr.mxu0 0.0
        %256 = vmatpush1.msra.mxu0 0.0
        %257 = vmatprep.subr.mxu0 0.0
        %258 = vmatpush1.msra.mxu0 0.0
        %259 = vmatprep.subr.mxu0 0.0
        %260 = vmatpush1.msra.mxu0 0.0
        %261 = vmatprep.subr.mxu0 0.0
        %262 = vmatpush1.msra.mxu0 0.0
        %263 = vmatprep.subr.mxu0 0.0
        %264 = vmatpush1.msra.mxu0 0.0
        %265 = vmatprep.subr.mxu0 0.0
        %266 = vmatpush1.msra.mxu0 0.0
        %267 = vmatprep.subr.mxu0 0.0
        %268 = vmatpush1.msra.mxu0 0.0
        %269 = vmatprep.subr.mxu0 0.0
        %270 = vmatpush1.msra.mxu0 0.0
        %271 = vmatprep.subr.mxu0 0.0
        %272 = vmatpush1.msra.mxu0 0.0
        %273 = vmatprep.subr.mxu0 0.0
        %274 = vmatpush1.msra.mxu0 0.0
        %275 = vmatprep.subr.mxu0 0.0
        %276 = vmatpush1.msra.mxu0 0.0
        %277 = vmatprep.subr.mxu0 0.0
        %278 = vmatpush1.msra.mxu0 0.0
        %279 = vmatprep.subr.mxu0 0.0
        %280 = vmatpush1.msra.mxu0 0.0
        %281 = vmatprep.subr.mxu0 0.0
        %282 = vmatpush1.msra.mxu0 0.0
        %283 = vmatprep.subr.mxu0 0.0
        %284 = vmatpush1.msra.mxu0 0.0
        %285 = vmatprep.subr.mxu0 0.0
        %286 = vmatpush1.msra.mxu0 0.0
        %287 = vmatprep.subr.mxu0 0.0
        %288 = vmatpush1.msra.mxu0 0.0
        %289 = vmatprep.subr.mxu0 0.0
        %290 = vmatpush1.msra.mxu0 0.0
        %291 = vmatprep.subr.mxu0 0.0
        %292 = vmatpush1.msra.mxu0 0.0
        %293 = vmatprep.subr.mxu0 0.0
        %294 = vmatpush1.msra.mxu0 0.0
        %295 = vmatprep.subr.mxu0 0.0
        %296 = vmatpush1.msra.mxu0 0.0
        %297 = vmatprep.subr.mxu0 0.0
        %298 = vmatpush1.msra.mxu0 0.0
        %299 = vmatprep.subr.mxu0 0.0
        %300 = vmatpush1.msra.mxu0 0.0
        %301 = vmatprep.subr.mxu0 0.0
        %302 = vmatpush1.msra.mxu0 0.0
        %303 = vmatprep.subr.mxu0 0.0
        %304 = vmatpush1.msra.mxu0 0.0
        %305 = vmatprep.subr.mxu0 0.0
        %306 = vmatpush1.msra.mxu0 0.0
        %307 = vmatprep.subr.mxu0 0.0
        %308 = vmatpush1.msra.mxu0 0.0
        %309 = vmatprep.subr.mxu0 0.0
        %310 = vmatpush1.msra.mxu0 0.0
        %311 = vmatprep.subr.mxu0 0.0
        %312 = vmatpush1.msra.mxu0 0.0
        %313 = vmatprep.subr.mxu0 0.0
        %314 = vmatpush1.msra.mxu0 0.0
        %315 = vmatprep.mubr.f32.mxu0 0.0
        %v316 = vand.u32 %v248, 4294901760
        %v317 = vsub.f32 %v248, %v316
        %v318 = vand.u32 %v317, 4294901760
        %v319 = vsub.f32 %v317, %v318
        %v320 = vand.u32 %v319, 4294901760
        %321 = vmatmul.mubr.f32.gmra.mrb[0].mxu0 %v320
        %v322 = vpop.f32.mrb[0].mxu0
        %v323 = vadd.f32 0.0, %v322
        %v324 = vpop.f32.mrb[0].mxu0
        %325 = vdwg.mxu0
        %326 = vmatprep.subr.mxu0 0.0
        %v327 = vand.u32 %v245, 4294901760
        %v328 = vsub.f32 %v245, %v327
        %v329 = vand.u32 %v328, 4294901760
        %v330 = vsub.f32 %v328, %v329
        %v331 = vand.u32 %v330, 4294901760
        %332 = vmatpush1.msra.mxu0 %v331
        %333 = vmatprep.subr.mxu0 0.0
        %334 = vmatpush1.msra.mxu0 0.0
        %335 = vmatprep.subr.mxu0 0.0
        %336 = vmatpush1.msra.mxu0 0.0
        %337 = vmatprep.subr.mxu0 0.0
        %338 = vmatpush1.msra.mxu0 0.0
        %339 = vmatprep.subr.mxu0 0.0
        %340 = vmatpush1.msra.mxu0 0.0
        %341 = vmatprep.subr.mxu0 0.0
        %342 = vmatpush1.msra.mxu0 0.0
        %343 = vmatprep.subr.mxu0 0.0
        %344 = vmatpush1.msra.mxu0 0.0
        %345 = vmatprep.subr.mxu0 0.0
        %346 = vmatpush1.msra.mxu0 0.0
        %347 = vmatprep.subr.mxu0 0.0
        %348 = vmatpush1.msra.mxu0 0.0
        %349 = vmatprep.subr.mxu0 0.0
        %350 = vmatpush1.msra.mxu0 0.0
        %351 = vmatprep.subr.mxu0 0.0
        %352 = vmatpush1.msra.mxu0 0.0
        %353 = vmatprep.subr.mxu0 0.0
        %354 = vmatpush1.msra.mxu0 0.0
        %355 = vmatprep.subr.mxu0 0.0
        %356 = vmatpush1.msra.mxu0 0.0
        %357 = vmatprep.subr.mxu0 0.0
        %358 = vmatpush1.msra.mxu0 0.0
        %359 = vmatprep.subr.mxu0 0.0
        %360 = vmatpush1.msra.mxu0 0.0
        %361 = vmatprep.subr.mxu0 0.0
        %362 = vmatpush1.msra.mxu0 0.0
        %363 = vmatprep.subr.mxu0 0.0
        %364 = vmatpush1.msra.mxu0 0.0
        %365 = vmatprep.subr.mxu0 0.0
        %366 = vmatpush1.msra.mxu0 0.0
        %367 = vmatprep.subr.mxu0 0.0
        %368 = vmatpush1.msra.mxu0 0.0
        %369 = vmatprep.subr.mxu0 0.0
        %370 = vmatpush1.msra.mxu0 0.0
        %371 = vmatprep.subr.mxu0 0.0
        %372 = vmatpush1.msra.mxu0 0.0
        %373 = vmatprep.subr.mxu0 0.0
        %374 = vmatpush1.msra.mxu0 0.0
        %375 = vmatprep.subr.mxu0 0.0
        %376 = vmatpush1.msra.mxu0 0.0
        %377 = vmatprep.subr.mxu0 0.0
        %378 = vmatpush1.msra.mxu0 0.0
        %379 = vmatprep.subr.mxu0 0.0
        %380 = vmatpush1.msra.mxu0 0.0
        %381 = vmatprep.subr.mxu0 0.0
        %382 = vmatpush1.msra.mxu0 0.0
        %383 = vmatprep.subr.mxu0 0.0
        %384 = vmatpush1.msra.mxu0 0.0
        %385 = vmatprep.subr.mxu0 0.0
        %386 = vmatpush1.msra.mxu0 0.0
        %387 = vmatprep.subr.mxu0 0.0
        %388 = vmatpush1.msra.mxu0 0.0
        %389 = vmatprep.subr.mxu0 0.0
        %390 = vmatpush1.msra.mxu0 0.0
        %391 = vmatprep.subr.mxu0 0.0
        %392 = vmatpush1.msra.mxu0 0.0
        %393 = vmatprep.subr.mxu0 0.0
        %394 = vmatpush1.msra.mxu0 0.0
        %395 = vmatprep.mubr.f32.mxu0 0.0
        %v396 = vand.u32 %v248, 4294901760
        %397 = vmatmul.mubr.f32.gmra.mrb[0].mxu0 %v396
        %v398 = vpop.f32.mrb[0].mxu0
        %v399 = vadd.f32 %v323, %v398
        %v400 = vpop.f32.mrb[0].mxu0
        %401 = vdwg.mxu0
        %402 = vmatprep.subr.mxu0 0.0
        %v403 = vand.u32 %v245, 4294901760
        %v404 = vsub.f32 %v245, %v403
        %405 = vmatpush1.msra.mxu0 %v404
        %406 = vmatprep.subr.mxu0 0.0
        %407 = vmatpush1.msra.mxu0 0.0
        %408 = vmatprep.subr.mxu0 0.0
        %409 = vmatpush1.msra.mxu0 0.0
        %410 = vmatprep.subr.mxu0 0.0
        %411 = vmatpush1.msra.mxu0 0.0
        %412 = vmatprep.subr.mxu0 0.0
        %413 = vmatpush1.msra.mxu0 0.0
        %414 = vmatprep.subr.mxu0 0.0
        %415 = vmatpush1.msra.mxu0 0.0
        %416 = vmatprep.subr.mxu0 0.0
        %417 = vmatpush1.msra.mxu0 0.0
        %418 = vmatprep.subr.mxu0 0.0
        %419 = vmatpush1.msra.mxu0 0.0
        %420 = vmatprep.subr.mxu0 0.0
        %421 = vmatpush1.msra.mxu0 0.0
        %422 = vmatprep.subr.mxu0 0.0
        %423 = vmatpush1.msra.mxu0 0.0
        %424 = vmatprep.subr.mxu0 0.0
        %425 = vmatpush1.msra.mxu0 0.0
        %426 = vmatprep.subr.mxu0 0.0
        %427 = vmatpush1.msra.mxu0 0.0
        %428 = vmatprep.subr.mxu0 0.0
        %429 = vmatpush1.msra.mxu0 0.0
        %430 = vmatprep.subr.mxu0 0.0
        %431 = vmatpush1.msra.mxu0 0.0
        %432 = vmatprep.subr.mxu0 0.0
        %433 = vmatpush1.msra.mxu0 0.0
        %434 = vmatprep.subr.mxu0 0.0
        %435 = vmatpush1.msra.mxu0 0.0
        %436 = vmatprep.subr.mxu0 0.0
        %437 = vmatpush1.msra.mxu0 0.0
        %438 = vmatprep.subr.mxu0 0.0
        %439 = vmatpush1.msra.mxu0 0.0
        %440 = vmatprep.subr.mxu0 0.0
        %441 = vmatpush1.msra.mxu0 0.0
        %442 = vmatprep.subr.mxu0 0.0
        %443 = vmatpush1.msra.mxu0 0.0
        %444 = vmatprep.subr.mxu0 0.0
        %445 = vmatpush1.msra.mxu0 0.0
        %446 = vmatprep.subr.mxu0 0.0
        %447 = vmatpush1.msra.mxu0 0.0
        %448 = vmatprep.subr.mxu0 0.0
        %449 = vmatpush1.msra.mxu0 0.0
        %450 = vmatprep.subr.mxu0 0.0
        %451 = vmatpush1.msra.mxu0 0.0
        %452 = vmatprep.subr.mxu0 0.0
        %453 = vmatpush1.msra.mxu0 0.0
        %454 = vmatprep.subr.mxu0 0.0
        %455 = vmatpush1.msra.mxu0 0.0
        %456 = vmatprep.subr.mxu0 0.0
        %457 = vmatpush1.msra.mxu0 0.0
        %458 = vmatprep.subr.mxu0 0.0
        %459 = vmatpush1.msra.mxu0 0.0
        %460 = vmatprep.subr.mxu0 0.0
        %461 = vmatpush1.msra.mxu0 0.0
        %462 = vmatprep.subr.mxu0 0.0
        %463 = vmatpush1.msra.mxu0 0.0
        %464 = vmatprep.subr.mxu0 0.0
        %465 = vmatpush1.msra.mxu0 0.0
        %466 = vmatprep.subr.mxu0 0.0
        %467 = vmatpush1.msra.mxu0 0.0
        %468 = vmatprep.mubr.f32.mxu0 0.0
        %v469 = vand.u32 %v248, 4294901760
        %v470 = vsub.f32 %v248, %v469
        %471 = vmatmul.mubr.f32.gmra.mrb[0].mxu0 %v470
        %v472 = vpop.f32.mrb[0].mxu0
        %v473 = vadd.f32 %v399, %v472
        %v474 = vpop.f32.mrb[0].mxu0
        %475 = vdwg.mxu0
        %476 = vmatprep.subr.mxu0 0.0
        %v477 = vand.u32 %v245, 4294901760
        %478 = vmatpush1.msra.mxu0 %v477
        %479 = vmatprep.subr.mxu0 0.0
        %480 = vmatpush1.msra.mxu0 0.0
        %481 = vmatprep.subr.mxu0 0.0
        %482 = vmatpush1.msra.mxu0 0.0
        %483 = vmatprep.subr.mxu0 0.0
        %484 = vmatpush1.msra.mxu0 0.0
        %485 = vmatprep.subr.mxu0 0.0
        %486 = vmatpush1.msra.mxu0 0.0
        %487 = vmatprep.subr.mxu0 0.0
        %488 = vmatpush1.msra.mxu0 0.0
        %489 = vmatprep.subr.mxu0 0.0
        %490 = vmatpush1.msra.mxu0 0.0
        %491 = vmatprep.subr.mxu0 0.0
        %492 = vmatpush1.msra.mxu0 0.0
        %493 = vmatprep.subr.mxu0 0.0
        %494 = vmatpush1.msra.mxu0 0.0
        %495 = vmatprep.subr.mxu0 0.0
        %496 = vmatpush1.msra.mxu0 0.0
        %497 = vmatprep.subr.mxu0 0.0
        %498 = vmatpush1.msra.mxu0 0.0
        %499 = vmatprep.subr.mxu0 0.0
        %500 = vmatpush1.msra.mxu0 0.0
        %501 = vmatprep.subr.mxu0 0.0
        %502 = vmatpush1.msra.mxu0 0.0
        %503 = vmatprep.subr.mxu0 0.0
        %504 = vmatpush1.msra.mxu0 0.0
        %505 = vmatprep.subr.mxu0 0.0
        %506 = vmatpush1.msra.mxu0 0.0
        %507 = vmatprep.subr.mxu0 0.0
        %508 = vmatpush1.msra.mxu0 0.0
        %509 = vmatprep.subr.mxu0 0.0
        %510 = vmatpush1.msra.mxu0 0.0
        %511 = vmatprep.subr.mxu0 0.0
        %512 = vmatpush1.msra.mxu0 0.0
        %513 = vmatprep.subr.mxu0 0.0
        %514 = vmatpush1.msra.mxu0 0.0
        %515 = vmatprep.subr.mxu0 0.0
        %516 = vmatpush1.msra.mxu0 0.0
        %517 = vmatprep.subr.mxu0 0.0
        %518 = vmatpush1.msra.mxu0 0.0
        %519 = vmatprep.subr.mxu0 0.0
        %520 = vmatpush1.msra.mxu0 0.0
        %521 = vmatprep.subr.mxu0 0.0
        %522 = vmatpush1.msra.mxu0 0.0
        %523 = vmatprep.subr.mxu0 0.0
        %524 = vmatpush1.msra.mxu0 0.0
        %525 = vmatprep.subr.mxu0 0.0
        %526 = vmatpush1.msra.mxu0 0.0
        %527 = vmatprep.subr.mxu0 0.0
        %528 = vmatpush1.msra.mxu0 0.0
        %529 = vmatprep.subr.mxu0 0.0
        %530 = vmatpush1.msra.mxu0 0.0
        %531 = vmatprep.subr.mxu0 0.0
        %532 = vmatpush1.msra.mxu0 0.0
        %533 = vmatprep.subr.mxu0 0.0
        %534 = vmatpush1.msra.mxu0 0.0
        %535 = vmatprep.subr.mxu0 0.0
        %536 = vmatpush1.msra.mxu0 0.0
        %537 = vmatprep.subr.mxu0 0.0
        %538 = vmatpush1.msra.mxu0 0.0
        %539 = vmatprep.subr.mxu0 0.0
        %540 = vmatpush1.msra.mxu0 0.0
        %541 = vmatprep.mubr.f32.mxu0 0.0
        %v542 = vand.u32 %v248, 4294901760
        %v543 = vsub.f32 %v248, %v542
        %v544 = vand.u32 %v543, 4294901760
        %545 = vmatmul.mubr.f32.gmra.mrb[0].mxu0 %v544
        %v546 = vpop.f32.mrb[0].mxu0
        %v547 = vadd.f32 %v473, %v546
        %v548 = vpop.f32.mrb[0].mxu0
        %549 = vdwg.mxu0
        %550 = vmatprep.subr.mxu0 0.0
        %v551 = vand.u32 %v245, 4294901760
        %v552 = vsub.f32 %v245, %v551
        %v553 = vand.u32 %v552, 4294901760
        %554 = vmatpush1.msra.mxu0 %v553
        %555 = vmatprep.subr.mxu0 0.0
        %556 = vmatpush1.msra.mxu0 0.0
        %557 = vmatprep.subr.mxu0 0.0
        %558 = vmatpush1.msra.mxu0 0.0
        %559 = vmatprep.subr.mxu0 0.0
        %560 = vmatpush1.msra.mxu0 0.0
        %561 = vmatprep.subr.mxu0 0.0
        %562 = vmatpush1.msra.mxu0 0.0
        %563 = vmatprep.subr.mxu0 0.0
        %564 = vmatpush1.msra.mxu0 0.0
        %565 = vmatprep.subr.mxu0 0.0
        %566 = vmatpush1.msra.mxu0 0.0
        %567 = vmatprep.subr.mxu0 0.0
        %568 = vmatpush1.msra.mxu0 0.0
        %569 = vmatprep.subr.mxu0 0.0
        %570 = vmatpush1.msra.mxu0 0.0
        %571 = vmatprep.subr.mxu0 0.0
        %572 = vmatpush1.msra.mxu0 0.0
        %573 = vmatprep.subr.mxu0 0.0
        %574 = vmatpush1.msra.mxu0 0.0
        %575 = vmatprep.subr.mxu0 0.0
        %576 = vmatpush1.msra.mxu0 0.0
        %577 = vmatprep.subr.mxu0 0.0
        %578 = vmatpush1.msra.mxu0 0.0
        %579 = vmatprep.subr.mxu0 0.0
        %580 = vmatpush1.msra.mxu0 0.0
        %581 = vmatprep.subr.mxu0 0.0
        %582 = vmatpush1.msra.mxu0 0.0
        %583 = vmatprep.subr.mxu0 0.0
        %584 = vmatpush1.msra.mxu0 0.0
        %585 = vmatprep.subr.mxu0 0.0
        %586 = vmatpush1.msra.mxu0 0.0
        %587 = vmatprep.subr.mxu0 0.0
        %588 = vmatpush1.msra.mxu0 0.0
        %589 = vmatprep.subr.mxu0 0.0
        %590 = vmatpush1.msra.mxu0 0.0
        %591 = vmatprep.subr.mxu0 0.0
        %592 = vmatpush1.msra.mxu0 0.0
        %593 = vmatprep.subr.mxu0 0.0
        %594 = vmatpush1.msra.mxu0 0.0
        %595 = vmatprep.subr.mxu0 0.0
        %596 = vmatpush1.msra.mxu0 0.0
        %597 = vmatprep.subr.mxu0 0.0
        %598 = vmatpush1.msra.mxu0 0.0
        %599 = vmatprep.subr.mxu0 0.0
        %600 = vmatpush1.msra.mxu0 0.0
        %601 = vmatprep.subr.mxu0 0.0
        %602 = vmatpush1.msra.mxu0 0.0
        %603 = vmatprep.subr.mxu0 0.0
        %604 = vmatpush1.msra.mxu0 0.0
        %605 = vmatprep.subr.mxu0 0.0
        %606 = vmatpush1.msra.mxu0 0.0
        %607 = vmatprep.subr.mxu0 0.0
        %608 = vmatpush1.msra.mxu0 0.0
        %609 = vmatprep.subr.mxu0 0.0
        %610 = vmatpush1.msra.mxu0 0.0
        %611 = vmatprep.subr.mxu0 0.0
        %612 = vmatpush1.msra.mxu0 0.0
        %613 = vmatprep.subr.mxu0 0.0
        %614 = vmatpush1.msra.mxu0 0.0
        %615 = vmatprep.subr.mxu0 0.0
        %616 = vmatpush1.msra.mxu0 0.0
        %617 = vmatprep.mubr.f32.mxu0 0.0
        %v618 = vand.u32 %v248, 4294901760
        %619 = vmatmul.mubr.f32.gmra.mrb[0].mxu0 %v618
        %v620 = vpop.f32.mrb[0].mxu0
        %v621 = vadd.f32 %v547, %v620
        %v622 = vpop.f32.mrb[0].mxu0
        %623 = vdwg.mxu0
        %624 = vmatprep.subr.mxu0 0.0
        %v625 = vand.u32 %v245, 4294901760
        %626 = vmatpush1.msra.mxu0 %v625
        %627 = vmatprep.subr.mxu0 0.0
        %628 = vmatpush1.msra.mxu0 0.0
        %629 = vmatprep.subr.mxu0 0.0
        %630 = vmatpush1.msra.mxu0 0.0
        %631 = vmatprep.subr.mxu0 0.0
        %632 = vmatpush1.msra.mxu0 0.0
        %633 = vmatprep.subr.mxu0 0.0
        %634 = vmatpush1.msra.mxu0 0.0
        %635 = vmatprep.subr.mxu0 0.0
        %636 = vmatpush1.msra.mxu0 0.0
        %637 = vmatprep.subr.mxu0 0.0
        %638 = vmatpush1.msra.mxu0 0.0
        %639 = vmatprep.subr.mxu0 0.0
        %640 = vmatpush1.msra.mxu0 0.0
        %641 = vmatprep.subr.mxu0 0.0
        %642 = vmatpush1.msra.mxu0 0.0
        %643 = vmatprep.subr.mxu0 0.0
        %644 = vmatpush1.msra.mxu0 0.0
        %645 = vmatprep.subr.mxu0 0.0
        %646 = vmatpush1.msra.mxu0 0.0
        %647 = vmatprep.subr.mxu0 0.0
        %648 = vmatpush1.msra.mxu0 0.0
        %649 = vmatprep.subr.mxu0 0.0
        %650 = vmatpush1.msra.mxu0 0.0
        %651 = vmatprep.subr.mxu0 0.0
        %652 = vmatpush1.msra.mxu0 0.0
        %653 = vmatprep.subr.mxu0 0.0
        %654 = vmatpush1.msra.mxu0 0.0
        %655 = vmatprep.subr.mxu0 0.0
        %656 = vmatpush1.msra.mxu0 0.0
        %657 = vmatprep.subr.mxu0 0.0
        %658 = vmatpush1.msra.mxu0 0.0
        %659 = vmatprep.subr.mxu0 0.0
        %660 = vmatpush1.msra.mxu0 0.0
        %661 = vmatprep.subr.mxu0 0.0
        %662 = vmatpush1.msra.mxu0 0.0
        %663 = vmatprep.subr.mxu0 0.0
        %664 = vmatpush1.msra.mxu0 0.0
        %665 = vmatprep.subr.mxu0 0.0
        %666 = vmatpush1.msra.mxu0 0.0
        %667 = vmatprep.subr.mxu0 0.0
        %668 = vmatpush1.msra.mxu0 0.0
        %669 = vmatprep.subr.mxu0 0.0
        %670 = vmatpush1.msra.mxu0 0.0
        %671 = vmatprep.subr.mxu0 0.0
        %672 = vmatpush1.msra.mxu0 0.0
        %673 = vmatprep.subr.mxu0 0.0
        %674 = vmatpush1.msra.mxu0 0.0
        %675 = vmatprep.subr.mxu0 0.0
        %676 = vmatpush1.msra.mxu0 0.0
        %677 = vmatprep.subr.mxu0 0.0
        %678 = vmatpush1.msra.mxu0 0.0
        %679 = vmatprep.subr.mxu0 0.0
        %680 = vmatpush1.msra.mxu0 0.0
        %681 = vmatprep.subr.mxu0 0.0
        %682 = vmatpush1.msra.mxu0 0.0
        %683 = vmatprep.subr.mxu0 0.0
        %684 = vmatpush1.msra.mxu0 0.0
        %685 = vmatprep.subr.mxu0 0.0
        %686 = vmatpush1.msra.mxu0 0.0
        %687 = vmatprep.subr.mxu0 0.0
        %688 = vmatpush1.msra.mxu0 0.0
        %689 = vmatprep.mubr.f32.mxu0 0.0
        %v690 = vand.u32 %v248, 4294901760
        %691 = vmatmul.mubr.f32.gmra.mrb[0].mxu0 %v690
        %v692 = vpop.f32.mrb[0].mxu0
        %v693 = vadd.f32 %v621, %v692
        %v694 = vpop.f32.mrb[0].mxu0
        %695 = vdwg.mxu0
        %v696 = vmul.f32 %v693, 1.442695
        %v697 = vpow.pop %v696
        %v698 = vld [vmem:[#allocation2] sm:$0x1]
        %v699 = vld [vmem:[%s234] sm:$0x1]
        %v701 = vsel %vm246, %v699, 0
        %703 = vmatprep.subr.mxu0 0.0
        %v704 = vand.u32 %v697, 4294901760
        %705 = vmatpush1.msra.mxu0 %v704
        %706 = vmatprep.subr.mxu0 0.0
        %707 = vmatpush1.msra.mxu0 0.0
        %708 = vmatprep.subr.mxu0 0.0
        %709 = vmatpush1.msra.mxu0 0.0
        %710 = vmatprep.subr.mxu0 0.0
        %711 = vmatpush1.msra.mxu0 0.0
        %712 = vmatprep.subr.mxu0 0.0
        %713 = vmatpush1.msra.mxu0 0.0
        %714 = vmatprep.subr.mxu0 0.0
        %715 = vmatpush1.msra.mxu0 0.0
        %716 = vmatprep.subr.mxu0 0.0
        %717 = vmatpush1.msra.mxu0 0.0
        %718 = vmatprep.subr.mxu0 0.0
        %719 = vmatpush1.msra.mxu0 0.0
        %720 = vmatprep.subr.mxu0 0.0
        %721 = vmatpush1.msra.mxu0 0.0
        %722 = vmatprep.subr.mxu0 0.0
        %723 = vmatpush1.msra.mxu0 0.0
        %724 = vmatprep.subr.mxu0 0.0
        %725 = vmatpush1.msra.mxu0 0.0
        %726 = vmatprep.subr.mxu0 0.0
        %727 = vmatpush1.msra.mxu0 0.0
        %728 = vmatprep.subr.mxu0 0.0
        %729 = vmatpush1.msra.mxu0 0.0
        %730 = vmatprep.subr.mxu0 0.0
        %731 = vmatpush1.msra.mxu0 0.0
        %732 = vmatprep.subr.mxu0 0.0
        %733 = vmatpush1.msra.mxu0 0.0
        %734 = vmatprep.subr.mxu0 0.0
        %735 = vmatpush1.msra.mxu0 0.0
        %736 = vmatprep.subr.mxu0 0.0
        %737 = vmatpush1.msra.mxu0 0.0
        %738 = vmatprep.subr.mxu0 0.0
        %739 = vmatpush1.msra.mxu0 0.0
        %740 = vmatprep.subr.mxu0 0.0
        %741 = vmatpush1.msra.mxu0 0.0
        %742 = vmatprep.subr.mxu0 0.0
        %743 = vmatpush1.msra.mxu0 0.0
        %744 = vmatprep.subr.mxu0 0.0
        %745 = vmatpush1.msra.mxu0 0.0
        %746 = vmatprep.subr.mxu0 0.0
        %747 = vmatpush1.msra.mxu0 0.0
        %748 = vmatprep.subr.mxu0 0.0
        %749 = vmatpush1.msra.mxu0 0.0
        %750 = vmatprep.subr.mxu0 0.0
        %751 = vmatpush1.msra.mxu0 0.0
        %752 = vmatprep.subr.mxu0 0.0
        %753 = vmatpush1.msra.mxu0 0.0
        %754 = vmatprep.subr.mxu0 0.0
        %755 = vmatpush1.msra.mxu0 0.0
        %756 = vmatprep.subr.mxu0 0.0
        %757 = vmatpush1.msra.mxu0 0.0
        %758 = vmatprep.subr.mxu0 0.0
        %759 = vmatpush1.msra.mxu0 0.0
        %760 = vmatprep.subr.mxu0 0.0
        %761 = vmatpush1.msra.mxu0 0.0
        %762 = vmatprep.subr.mxu0 0.0
        %763 = vmatpush1.msra.mxu0 0.0
        %764 = vmatprep.subr.mxu0 0.0
        %765 = vmatpush1.msra.mxu0 0.0
        %766 = vmatprep.subr.mxu0 0.0
        %767 = vmatpush1.msra.mxu0 0.0
        %768 = vmatprep.mubr.f32.mxu0 0.0
        %v769 = vand.u32 %v701, 4294901760
        %v770 = vsub.f32 %v701, %v769
        %v771 = vand.u32 %v770, 4294901760
        %v772 = vsub.f32 %v770, %v771
        %v773 = vand.u32 %v772, 4294901760
        %774 = vmatmul.mubr.f32.gmra.mrb[0].mxu0 %v773
        %v775 = vpop.f32.mrb[0].mxu0
        %v776 = vadd.f32 0.0, %v775
        %v777 = vpop.f32.mrb[0].mxu0
        %778 = vdwg.mxu0
        %779 = vmatprep.subr.mxu0 0.0
        %v780 = vand.u32 %v697, 4294901760
        %v781 = vsub.f32 %v697, %v780
        %v782 = vand.u32 %v781, 4294901760
        %v783 = vsub.f32 %v781, %v782
        %v784 = vand.u32 %v783, 4294901760
        %785 = vmatpush1.msra.mxu0 %v784
        %786 = vmatprep.subr.mxu0 0.0
        %787 = vmatpush1.msra.mxu0 0.0
        %788 = vmatprep.subr.mxu0 0.0
        %789 = vmatpush1.msra.mxu0 0.0
        %790 = vmatprep.subr.mxu0 0.0
        %791 = vmatpush1.msra.mxu0 0.0
        %792 = vmatprep.subr.mxu0 0.0
        %793 = vmatpush1.msra.mxu0 0.0
        %794 = vmatprep.subr.mxu0 0.0
        %795 = vmatpush1.msra.mxu0 0.0
        %796 = vmatprep.subr.mxu0 0.0
        %797 = vmatpush1.msra.mxu0 0.0
        %798 = vmatprep.subr.mxu0 0.0
        %799 = vmatpush1.msra.mxu0 0.0
        %800 = vmatprep.subr.mxu0 0.0
        %801 = vmatpush1.msra.mxu0 0.0
        %802 = vmatprep.subr.mxu0 0.0
        %803 = vmatpush1.msra.mxu0 0.0
        %804 = vmatprep.subr.mxu0 0.0
        %805 = vmatpush1.msra.mxu0 0.0
        %806 = vmatprep.subr.mxu0 0.0
        %807 = vmatpush1.msra.mxu0 0.0
        %808 = vmatprep.subr.mxu0 0.0
        %809 = vmatpush1.msra.mxu0 0.0
        %810 = vmatprep.subr.mxu0 0.0
        %811 = vmatpush1.msra.mxu0 0.0
        %812 = vmatprep.subr.mxu0 0.0
        %813 = vmatpush1.msra.mxu0 0.0
        %814 = vmatprep.subr.mxu0 0.0
        %815 = vmatpush1.msra.mxu0 0.0
        %816 = vmatprep.subr.mxu0 0.0
        %817 = vmatpush1.msra.mxu0 0.0
        %818 = vmatprep.subr.mxu0 0.0
        %819 = vmatpush1.msra.mxu0 0.0
        %820 = vmatprep.subr.mxu0 0.0
        %821 = vmatpush1.msra.mxu0 0.0
        %822 = vmatprep.subr.mxu0 0.0
        %823 = vmatpush1.msra.mxu0 0.0
        %824 = vmatprep.subr.mxu0 0.0
        %825 = vmatpush1.msra.mxu0 0.0
        %826 = vmatprep.subr.mxu0 0.0
        %827 = vmatpush1.msra.mxu0 0.0
        %828 = vmatprep.subr.mxu0 0.0
        %829 = vmatpush1.msra.mxu0 0.0
        %830 = vmatprep.subr.mxu0 0.0
        %831 = vmatpush1.msra.mxu0 0.0
        %832 = vmatprep.subr.mxu0 0.0
        %833 = vmatpush1.msra.mxu0 0.0
        %834 = vmatprep.subr.mxu0 0.0
        %835 = vmatpush1.msra.mxu0 0.0
        %836 = vmatprep.subr.mxu0 0.0
        %837 = vmatpush1.msra.mxu0 0.0
        %838 = vmatprep.subr.mxu0 0.0
        %839 = vmatpush1.msra.mxu0 0.0
        %840 = vmatprep.subr.mxu0 0.0
        %841 = vmatpush1.msra.mxu0 0.0
        %842 = vmatprep.subr.mxu0 0.0
        %843 = vmatpush1.msra.mxu0 0.0
        %844 = vmatprep.subr.mxu0 0.0
        %845 = vmatpush1.msra.mxu0 0.0
        %846 = vmatprep.subr.mxu0 0.0
        %847 = vmatpush1.msra.mxu0 0.0
        %848 = vmatprep.mubr.f32.mxu0 0.0
        %v849 = vand.u32 %v701, 4294901760
        %850 = vmatmul.mubr.f32.gmra.mrb[0].mxu0 %v849
        %v851 = vpop.f32.mrb[0].mxu0
        %v852 = vadd.f32 %v776, %v851
        %v853 = vpop.f32.mrb[0].mxu0
        %854 = vdwg.mxu0
        %855 = vmatprep.subr.mxu0 0.0
        %v856 = vand.u32 %v697, 4294901760
        %v857 = vsub.f32 %v697, %v856
        %858 = vmatpush1.msra.mxu0 %v857
        %859 = vmatprep.subr.mxu0 0.0
        %860 = vmatpush1.msra.mxu0 0.0
        %861 = vmatprep.subr.mxu0 0.0
        %862 = vmatpush1.msra.mxu0 0.0
        %863 = vmatprep.subr.mxu0 0.0
        %864 = vmatpush1.msra.mxu0 0.0
        %865 = vmatprep.subr.mxu0 0.0
        %866 = vmatpush1.msra.mxu0 0.0
        %867 = vmatprep.subr.mxu0 0.0
        %868 = vmatpush1.msra.mxu0 0.0
        %869 = vmatprep.subr.mxu0 0.0
        %870 = vmatpush1.msra.mxu0 0.0
        %871 = vmatprep.subr.mxu0 0.0
        %872 = vmatpush1.msra.mxu0 0.0
        %873 = vmatprep.subr.mxu0 0.0
        %874 = vmatpush1.msra.mxu0 0.0
        %875 = vmatprep.subr.mxu0 0.0
        %876 = vmatpush1.msra.mxu0 0.0
        %877 = vmatprep.subr.mxu0 0.0
        %878 = vmatpush1.msra.mxu0 0.0
        %879 = vmatprep.subr.mxu0 0.0
        %880 = vmatpush1.msra.mxu0 0.0
        %881 = vmatprep.subr.mxu0 0.0
        %882 = vmatpush1.msra.mxu0 0.0
        %883 = vmatprep.subr.mxu0 0.0
        %884 = vmatpush1.msra.mxu0 0.0
        %885 = vmatprep.subr.mxu0 0.0
        %886 = vmatpush1.msra.mxu0 0.0
        %887 = vmatprep.subr.mxu0 0.0
        %888 = vmatpush1.msra.mxu0 0.0
        %889 = vmatprep.subr.mxu0 0.0
        %890 = vmatpush1.msra.mxu0 0.0
        %891 = vmatprep.subr.mxu0 0.0
        %892 = vmatpush1.msra.mxu0 0.0
        %893 = vmatprep.subr.mxu0 0.0
        %894 = vmatpush1.msra.mxu0 0.0
        %895 = vmatprep.subr.mxu0 0.0
        %896 = vmatpush1.msra.mxu0 0.0
        %897 = vmatprep.subr.mxu0 0.0
        %898 = vmatpush1.msra.mxu0 0.0
        %899 = vmatprep.subr.mxu0 0.0
        %900 = vmatpush1.msra.mxu0 0.0
        %901 = vmatprep.subr.mxu0 0.0
        %902 = vmatpush1.msra.mxu0 0.0
        %903 = vmatprep.subr.mxu0 0.0
        %904 = vmatpush1.msra.mxu0 0.0
        %905 = vmatprep.subr.mxu0 0.0
        %906 = vmatpush1.msra.mxu0 0.0
        %907 = vmatprep.subr.mxu0 0.0
        %908 = vmatpush1.msra.mxu0 0.0
        %909 = vmatprep.subr.mxu0 0.0
        %910 = vmatpush1.msra.mxu0 0.0
        %911 = vmatprep.subr.mxu0 0.0
        %912 = vmatpush1.msra.mxu0 0.0
        %913 = vmatprep.subr.mxu0 0.0
        %914 = vmatpush1.msra.mxu0 0.0
        %915 = vmatprep.subr.mxu0 0.0
        %916 = vmatpush1.msra.mxu0 0.0
        %917 = vmatprep.subr.mxu0 0.0
        %918 = vmatpush1.msra.mxu0 0.0
        %919 = vmatprep.subr.mxu0 0.0
        %920 = vmatpush1.msra.mxu0 0.0
        %921 = vmatprep.mubr.f32.mxu0 0.0
        %v922 = vand.u32 %v701, 4294901760
        %v923 = vsub.f32 %v701, %v922
        %924 = vmatmul.mubr.f32.gmra.mrb[0].mxu0 %v923
        %v925 = vpop.f32.mrb[0].mxu0
        %v926 = vadd.f32 %v852, %v925
        %v927 = vpop.f32.mrb[0].mxu0
        %928 = vdwg.mxu0
        %929 = vmatprep.subr.mxu0 0.0
        %v930 = vand.u32 %v697, 4294901760
        %931 = vmatpush1.msra.mxu0 %v930
        %932 = vmatprep.subr.mxu0 0.0
        %933 = vmatpush1.msra.mxu0 0.0
        %934 = vmatprep.subr.mxu0 0.0
        %935 = vmatpush1.msra.mxu0 0.0
        %936 = vmatprep.subr.mxu0 0.0
        %937 = vmatpush1.msra.mxu0 0.0
        %938 = vmatprep.subr.mxu0 0.0
        %939 = vmatpush1.msra.mxu0 0.0
        %940 = vmatprep.subr.mxu0 0.0
        %941 = vmatpush1.msra.mxu0 0.0
        %942 = vmatprep.subr.mxu0 0.0
        %943 = vmatpush1.msra.mxu0 0.0
        %944 = vmatprep.subr.mxu0 0.0
        %945 = vmatpush1.msra.mxu0 0.0
        %946 = vmatprep.subr.mxu0 0.0
        %947 = vmatpush1.msra.mxu0 0.0
        %948 = vmatprep.subr.mxu0 0.0
        %949 = vmatpush1.msra.mxu0 0.0
        %950 = vmatprep.subr.mxu0 0.0
        %951 = vmatpush1.msra.mxu0 0.0
        %952 = vmatprep.subr.mxu0 0.0
        %953 = vmatpush1.msra.mxu0 0.0
        %954 = vmatprep.subr.mxu0 0.0
        %955 = vmatpush1.msra.mxu0 0.0
        %956 = vmatprep.subr.mxu0 0.0
        %957 = vmatpush1.msra.mxu0 0.0
        %958 = vmatprep.subr.mxu0 0.0
        %959 = vmatpush1.msra.mxu0 0.0
        %960 = vmatprep.subr.mxu0 0.0
        %961 = vmatpush1.msra.mxu0 0.0
        %962 = vmatprep.subr.mxu0 0.0
        %963 = vmatpush1.msra.mxu0 0.0
        %964 = vmatprep.subr.mxu0 0.0
        %965 = vmatpush1.msra.mxu0 0.0
        %966 = vmatprep.subr.mxu0 0.0
        %967 = vmatpush1.msra.mxu0 0.0
        %968 = vmatprep.subr.mxu0 0.0
        %969 = vmatpush1.msra.mxu0 0.0
        %970 = vmatprep.subr.mxu0 0.0
        %971 = vmatpush1.msra.mxu0 0.0
        %972 = vmatprep.subr.mxu0 0.0
        %973 = vmatpush1.msra.mxu0 0.0
        %974 = vmatprep.subr.mxu0 0.0
        %975 = vmatpush1.msra.mxu0 0.0
        %976 = vmatprep.subr.mxu0 0.0
        %977 = vmatpush1.msra.mxu0 0.0
        %978 = vmatprep.subr.mxu0 0.0
        %979 = vmatpush1.msra.mxu0 0.0
        %980 = vmatprep.subr.mxu0 0.0
        %981 = vmatpush1.msra.mxu0 0.0
        %982 = vmatprep.subr.mxu0 0.0
        %983 = vmatpush1.msra.mxu0 0.0
        %984 = vmatprep.subr.mxu0 0.0
        %985 = vmatpush1.msra.mxu0 0.0
        %986 = vmatprep.subr.mxu0 0.0
        %987 = vmatpush1.msra.mxu0 0.0
        %988 = vmatprep.subr.mxu0 0.0
        %989 = vmatpush1.msra.mxu0 0.0
        %990 = vmatprep.subr.mxu0 0.0
        %991 = vmatpush1.msra.mxu0 0.0
        %992 = vmatprep.subr.mxu0 0.0
        %993 = vmatpush1.msra.mxu0 0.0
        %994 = vmatprep.mubr.f32.mxu0 0.0
        %v995 = vand.u32 %v701, 4294901760
        %v996 = vsub.f32 %v701, %v995
        %v997 = vand.u32 %v996, 4294901760
        %998 = vmatmul.mubr.f32.gmra.mrb[0].mxu0 %v997
        %v999 = vpop.f32.mrb[0].mxu0
        %v1000 = vadd.f32 %v926, %v999
        %v1001 = vpop.f32.mrb[0].mxu0
        %1002 = vdwg.mxu0
        %1003 = vmatprep.subr.mxu0 0.0
        %v1004 = vand.u32 %v697, 4294901760
        %v1005 = vsub.f32 %v697, %v1004
        %v1006 = vand.u32 %v1005, 4294901760
        %1007 = vmatpush1.msra.mxu0 %v1006
        %1008 = vmatprep.subr.mxu0 0.0
        %1009 = vmatpush1.msra.mxu0 0.0
        %1010 = vmatprep.subr.mxu0 0.0
        %1011 = vmatpush1.msra.mxu0 0.0
        %1012 = vmatprep.subr.mxu0 0.0
        %1013 = vmatpush1.msra.mxu0 0.0
        %1014 = vmatprep.subr.mxu0 0.0
        %1015 = vmatpush1.msra.mxu0 0.0
        %1016 = vmatprep.subr.mxu0 0.0
        %1017 = vmatpush1.msra.mxu0 0.0
        %1018 = vmatprep.subr.mxu0 0.0
        %1019 = vmatpush1.msra.mxu0 0.0
        %1020 = vmatprep.subr.mxu0 0.0
        %1021 = vmatpush1.msra.mxu0 0.0
        %1022 = vmatprep.subr.mxu0 0.0
        %1023 = vmatpush1.msra.mxu0 0.0
        %1024 = vmatprep.subr.mxu0 0.0
        %1025 = vmatpush1.msra.mxu0 0.0
        %1026 = vmatprep.subr.mxu0 0.0
        %1027 = vmatpush1.msra.mxu0 0.0
        %1028 = vmatprep.subr.mxu0 0.0
        %1029 = vmatpush1.msra.mxu0 0.0
        %1030 = vmatprep.subr.mxu0 0.0
        %1031 = vmatpush1.msra.mxu0 0.0
        %1032 = vmatprep.subr.mxu0 0.0
        %1033 = vmatpush1.msra.mxu0 0.0
        %1034 = vmatprep.subr.mxu0 0.0
        %1035 = vmatpush1.msra.mxu0 0.0
        %1036 = vmatprep.subr.mxu0 0.0
        %1037 = vmatpush1.msra.mxu0 0.0
        %1038 = vmatprep.subr.mxu0 0.0
        %1039 = vmatpush1.msra.mxu0 0.0
        %1040 = vmatprep.subr.mxu0 0.0
        %1041 = vmatpush1.msra.mxu0 0.0
        %1042 = vmatprep.subr.mxu0 0.0
        %1043 = vmatpush1.msra.mxu0 0.0
        %1044 = vmatprep.subr.mxu0 0.0
        %1045 = vmatpush1.msra.mxu0 0.0
        %1046 = vmatprep.subr.mxu0 0.0
        %1047 = vmatpush1.msra.mxu0 0.0
        %1048 = vmatprep.subr.mxu0 0.0
        %1049 = vmatpush1.msra.mxu0 0.0
        %1050 = vmatprep.subr.mxu0 0.0
        %1051 = vmatpush1.msra.mxu0 0.0
        %1052 = vmatprep.subr.mxu0 0.0
        %1053 = vmatpush1.msra.mxu0 0.0
        %1054 = vmatprep.subr.mxu0 0.0
        %1055 = vmatpush1.msra.mxu0 0.0
        %1056 = vmatprep.subr.mxu0 0.0
        %1057 = vmatpush1.msra.mxu0 0.0
        %1058 = vmatprep.subr.mxu0 0.0
        %1059 = vmatpush1.msra.mxu0 0.0
        %1060 = vmatprep.subr.mxu0 0.0
        %1061 = vmatpush1.msra.mxu0 0.0
        %1062 = vmatprep.subr.mxu0 0.0
        %1063 = vmatpush1.msra.mxu0 0.0
        %1064 = vmatprep.subr.mxu0 0.0
        %1065 = vmatpush1.msra.mxu0 0.0
        %1066 = vmatprep.subr.mxu0 0.0
        %1067 = vmatpush1.msra.mxu0 0.0
        %1068 = vmatprep.subr.mxu0 0.0
        %1069 = vmatpush1.msra.mxu0 0.0
        %1070 = vmatprep.mubr.f32.mxu0 0.0
        %v1071 = vand.u32 %v701, 4294901760
        %1072 = vmatmul.mubr.f32.gmra.mrb[0].mxu0 %v1071
        %v1073 = vpop.f32.mrb[0].mxu0
        %v1074 = vadd.f32 %v1000, %v1073
        %v1075 = vpop.f32.mrb[0].mxu0
        %1076 = vdwg.mxu0
        %1077 = vmatprep.subr.mxu0 0.0
        %v1078 = vand.u32 %v697, 4294901760
        %1079 = vmatpush1.msra.mxu0 %v1078
        %1080 = vmatprep.subr.mxu0 0.0
        %1081 = vmatpush1.msra.mxu0 0.0
        %1082 = vmatprep.subr.mxu0 0.0
        %1083 = vmatpush1.msra.mxu0 0.0
        %1084 = vmatprep.subr.mxu0 0.0
        %1085 = vmatpush1.msra.mxu0 0.0
        %1086 = vmatprep.subr.mxu0 0.0
        %1087 = vmatpush1.msra.mxu0 0.0
        %1088 = vmatprep.subr.mxu0 0.0
        %1089 = vmatpush1.msra.mxu0 0.0
        %1090 = vmatprep.subr.mxu0 0.0
        %1091 = vmatpush1.msra.mxu0 0.0
        %1092 = vmatprep.subr.mxu0 0.0
        %1093 = vmatpush1.msra.mxu0 0.0
        %1094 = vmatprep.subr.mxu0 0.0
        %1095 = vmatpush1.msra.mxu0 0.0
        %1096 = vmatprep.subr.mxu0 0.0
        %1097 = vmatpush1.msra.mxu0 0.0
        %1098 = vmatprep.subr.mxu0 0.0
        %1099 = vmatpush1.msra.mxu0 0.0
        %1100 = vmatprep.subr.mxu0 0.0
        %1101 = vmatpush1.msra.mxu0 0.0
        %1102 = vmatprep.subr.mxu0 0.0
        %1103 = vmatpush1.msra.mxu0 0.0
        %1104 = vmatprep.subr.mxu0 0.0
        %1105 = vmatpush1.msra.mxu0 0.0
        %1106 = vmatprep.subr.mxu0 0.0
        %1107 = vmatpush1.msra.mxu0 0.0
        %1108 = vmatprep.subr.mxu0 0.0
        %1109 = vmatpush1.msra.mxu0 0.0
        %1110 = vmatprep.subr.mxu0 0.0
        %1111 = vmatpush1.msra.mxu0 0.0
        %1112 = vmatprep.subr.mxu0 0.0
        %1113 = vmatpush1.msra.mxu0 0.0
        %1114 = vmatprep.subr.mxu0 0.0
        %1115 = vmatpush1.msra.mxu0 0.0
        %1116 = vmatprep.subr.mxu0 0.0
        %1117 = vmatpush1.msra.mxu0 0.0
        %1118 = vmatprep.subr.mxu0 0.0
        %1119 = vmatpush1.msra.mxu0 0.0
        %1120 = vmatprep.subr.mxu0 0.0
        %1121 = vmatpush1.msra.mxu0 0.0
        %1122 = vmatprep.subr.mxu0 0.0
        %1123 = vmatpush1.msra.mxu0 0.0
        %1124 = vmatprep.subr.mxu0 0.0
        %1125 = vmatpush1.msra.mxu0 0.0
        %1126 = vmatprep.subr.mxu0 0.0
        %1127 = vmatpush1.msra.mxu0 0.0
        %1128 = vmatprep.subr.mxu0 0.0
        %1129 = vmatpush1.msra.mxu0 0.0
        %1130 = vmatprep.subr.mxu0 0.0
        %1131 = vmatpush1.msra.mxu0 0.0
        %1132 = vmatprep.subr.mxu0 0.0
        %1133 = vmatpush1.msra.mxu0 0.0
        %1134 = vmatprep.subr.mxu0 0.0
        %1135 = vmatpush1.msra.mxu0 0.0
        %1136 = vmatprep.subr.mxu0 0.0
        %1137 = vmatpush1.msra.mxu0 0.0
        %1138 = vmatprep.subr.mxu0 0.0
        %1139 = vmatpush1.msra.mxu0 0.0
        %1140 = vmatprep.subr.mxu0 0.0
        %1141 = vmatpush1.msra.mxu0 0.0
        %1142 = vmatprep.mubr.f32.mxu0 0.0
        %v1143 = vand.u32 %v701, 4294901760
        %1144 = vmatmul.mubr.f32.gmra.mrb[0].mxu0 %v1143
        %v1145 = vpop.f32.mrb[0].mxu0
        %v1146 = vadd.f32 %v1074, %v1145
        %v1147 = vpop.f32.mrb[0].mxu0
        %1148 = vdwg.mxu0
        %v1149 = vadd.f32 %v698, %v1146
        %1150 = vst [vmem:[#allocation2] sm:$0x1] %v1149
        // Predicated region
        $region37: #{slayer_exponential.1} parent=31 // pred_check
          %p1151 = pneg %p239
        $region38: #{slayer_exponential.1} parent=31 // pred_check_branch
          %1153 = sbr.rel (%p1151) target = $region40
        $region39: #{slayer_exponential.1} parent=31 // pred_region
          %v1154 = vld [vmem:[#allocation2] sm:$0x1]
          %1155 = vst [vmem:[%s221] sm:$0x1] %v1154
        $region40: #{slayer_exponential.1} parent=31 // pred_fallthru
          _
        %s1156 = sand.u32 %s128, 1
        %s1157 = scalar_lea.sflag [#allocation4], %s1156
        %s1158 = sand.u32 %s128, 1
        %s1159 = scalar_lea.vmem [#allocation3], %s1158
        // Predicated region
        $region41: #{slayer_exponential.1} parent=31 // pred_check
          %p1160 = pneg %p138
        $region42: #{slayer_exponential.1} parent=31 // pred_check_branch
          %1162 = sbr.rel (%p1160) target = $region44
        $region43: #{slayer_exponential.1} parent=31 // pred_region
          %s1164 = ssub.s32 16, 16
          %1165 = vsyncadd %s1157, %s1164
          %s1166 = sadd.s32 %s23, %s22
          %s1167 = smul.addr %s1166, 16
          %s1168 = scalar_lea.hbm %s3, %s1167
          %s1170 = sshll.u32 %s1159, 4
          %s1171 = int_to_ptr.vmem [resolvable:$true] %s1170
          %1173 = dma.vmem_to_hbm [thread:$0]  %s1171, 16, %s1168, %s1157
        $region44: #{slayer_exponential.1} parent=31 // pred_fallthru
          _
      $region32: #{slayer_exponential.1} parent=5 // pred_fallthru
        _
      %p1174 = scmp.le.s32.totalorder 2, %s12
      // Predicated region
      $region45: #{slayer_exponential.1} parent=5 // pred_check
        %p1175 = pneg %p1174
      $region46: #{slayer_exponential.1} parent=5 // pred_check_branch
        %1177 = sbr.rel (%p1175) target = $region48
      $region47: #{slayer_exponential.1} parent=5 // pred_region
        %s1178 = ssub.s32 %s12, 2
        // Predicated region
        $region49: #{slayer_exponential.1} parent=47 // pred_check
          %p1179 = pneg %p144
        $region50: #{slayer_exponential.1} parent=47 // pred_check_branch
          %1181 = sbr.rel (%p1179) target = $region52
        $region51: #{slayer_exponential.1} parent=47 // pred_region
          %s1182 = sand.u32 %s129, 1
          %s1183 = scalar_lea.sflag [#allocation4], %s1182
          %s1184 = sand.u32 %s129, 1
          %s1185 = scalar_lea.vmem [#allocation3], %s1184
          %1186 = dma.done %s1183, 16
        $region52: #{slayer_exponential.1} parent=47 // pred_fallthru
          _
      $region48: #{slayer_exponential.1} parent=5 // pred_fallthru
        _
    $region6: #{slayer_exponential.1} parent=1 // loop_footer
      %s16 = sadd.s32 1, %s12
    $region7: #{slayer_exponential.1} parent=1 // loop_footer_branch
      %11 = sbr.rel target = $region3
    $region8: #{slayer_exponential.1} parent=1 // loop_exit
      _
    %1187 = vsyncpa [#allocation4], 1
    %s1188 = scalar_lea.sflag [#allocation4], 1
    %1189 = vsyncpa %s1188, 1

</llo_original>
